<compile_context>
chip_gen: v5e
topology: v5e:2x2
jax: 0.10.0
libtpu: 0.0.40
codegen_flags: <defaults>
</compile_context>

<pallas_src>
import jax
import jax.numpy as jnp
from jax.experimental import pallas as pl
from jax.experimental.pallas import tpu as pltpu


def _evidence_kernel(x_ref, w_ref, b_ref, o_ref):
    # Linear: x @ W^T + b   (W pre-transposed to (dim, C) at prep time).
    z = jnp.dot(x_ref[...], w_ref[...], preferred_element_type=jnp.float32)
    z = z + b_ref[...]                      # (1, C) broadcasts over (TB, C)
    # PyTorch Softplus(beta=1, threshold=20): z for z > 20, else log1p(exp(z));
    # clamp the exp argument so the non-taken branch cannot overflow.
    sp = jnp.where(z > 20.0, z, jnp.log1p(jnp.exp(jnp.minimum(z, 20.0))))
    o_ref[...] = sp.astype(o_ref.dtype)


def prepare_params(weight, bias):
    """One-time parameter prep (call once, not per step).

    weight: (num_classes, dim) -> (dim, num_classes); bias: (C,) -> (1, C).
    """
    num_classes, _ = weight.shape
    return jnp.asarray(weight).T, jnp.asarray(bias).reshape(1, num_classes)


def _pick_batch_tile(batch, dim):
    # Target a (TB, dim) f32 x-tile of <= ~4 MiB so double-buffered x + out +
    # resident weight fit comfortably in scoped VMEM on v5e/v6e and on v7x's
    # smaller 64 MiB physical VMEM. TB in [8, 1024], multiple of 8.
    tb = (4 * 1024 * 1024) // (4 * max(dim, 1))
    tb = max(8, min(1024, tb))
    tb = (tb // 8) * 8
    if batch <= tb:
        return batch  # single block == full array extent (always legal)
    return tb


@jax.jit
def evidence_collector_apply(x, w_t, b2):
    """x: (B, dim) f32, w_t: (dim, C) f32, b2: (1, C) f32 -> (B, C) f32."""
    batch, dim = x.shape
    num_classes = w_t.shape[1]

    tb = _pick_batch_tile(batch, dim)
    num_blocks = pl.cdiv(batch, tb)

    # VMEM budget: double-buffered x & out tiles + resident weight/bias + headroom.
    vmem_bytes = (2 * tb * dim * 4
                  + 2 * tb * num_classes * 4
                  + 2 * (dim * num_classes * 4 + num_classes * 4)
                  + (2 << 20))
    vmem_bytes = int(min(max(vmem_bytes, 4 << 20), 96 << 20))

    return pl.pallas_call(
        _evidence_kernel,
        out_shape=jax.ShapeDtypeStruct((batch, num_classes), x.dtype),
        grid_spec=pl.GridSpec(
            grid=(num_blocks,),
            in_specs=[
                pl.BlockSpec((tb, dim), lambda i: (i, 0)),            # streamed x
                pl.BlockSpec((dim, num_classes), lambda i: (0, 0)),   # resident W^T
                pl.BlockSpec((1, num_classes), lambda i: (0, 0)),     # resident bias
            ],
            out_specs=pl.BlockSpec((tb, num_classes), lambda i: (i, 0)),
        ),
        compiler_params=pltpu.CompilerParams(
            dimension_semantics=("parallel",),
            vmem_limit_bytes=vmem_bytes,
        ),
    )(x, w_t, b2)


def evidence_collector(x, weight, bias):
    """Convenience wrapper taking the raw nn.Linear parameters."""
    w_t, b2 = prepare_params(weight, bias)
    return evidence_collector_apply(x, w_t, b2)


if __name__ == "__main__":
    # Small shapes consistent with the module: batch=8, dim=32, num_classes=4.
    B, dim, num_classes = 8, 32, 4

    key = jax.random.PRNGKey(0)
    kx, kw, kb = jax.random.split(key, 3)

    # Deterministic params mimicking nn.Linear's uniform(-1/sqrt(dim), 1/sqrt(dim)).
    bound = 1.0 / jnp.sqrt(jnp.float32(dim))
    weight = jax.random.uniform(kw, (num_classes, dim), jnp.float32, -bound, bound)
    bias = jax.random.uniform(kb, (num_classes,), jnp.float32, -bound, bound)
    x = jax.random.normal(kx, (B, dim), jnp.float32)

    # One-time parameter prep (no per-call host transpose), then the hot call.
    w_t, b2 = prepare_params(weight, bias)
    out = jax.block_until_ready(evidence_collector_apply(x, w_t, b2))

    # Reference in plain JAX: softplus(x @ W^T + b) with PyTorch semantics.
    z_ref = x @ weight.T + bias
    ref = jnp.where(z_ref > 20.0, z_ref, jnp.log1p(jnp.exp(jnp.minimum(z_ref, 20.0))))
    assert out.shape == (B, num_classes)
    assert jnp.allclose(out, ref, atol=1e-5, rtol=1e-5)

    print("KERNEL_OK")
</pallas_src>

<mosaic_0001>
module attributes {stable_mosaic.version = 11 : i64} {
  func.func @_evidence_kernel(%arg0: i32, %arg1: memref<8x32xf32, #tpu.memory_space<vmem>>, %arg2: memref<32x4xf32, #tpu.memory_space<vmem>>, %arg3: memref<1x4xf32, #tpu.memory_space<vmem>>, %arg4: memref<8x4xf32, #tpu.memory_space<vmem>>) attributes {dimension_semantics = [#tpu.dimension_semantics<parallel>], iteration_bounds = array<i64: 1>, scalar_prefetch = 0 : i64, scratch_operands = 0 : i64, tpu.core_type = #tpu.core_type<tc>, window_params = [{transform_indices = @transform_0, window_bounds = array<i64: 8, 32>}, {pipeline_mode = #tpu.pipeline_mode<synchronous>, transform_indices = @transform_1, window_bounds = array<i64: 32, 4>}, {pipeline_mode = #tpu.pipeline_mode<synchronous>, transform_indices = @transform_2, window_bounds = array<i64: 1, 4>}, {transform_indices = @transform_3, window_bounds = array<i64: 8, 4>}]} {
    %c0 = arith.constant 0 : index
    %c0_0 = arith.constant 0 : index
    %0 = vector.load %arg1[%c0, %c0_0] : memref<8x32xf32, #tpu.memory_space<vmem>>, vector<8x32xf32>
    %c0_1 = arith.constant 0 : index
    %c0_2 = arith.constant 0 : index
    %1 = vector.load %arg2[%c0_1, %c0_2] : memref<32x4xf32, #tpu.memory_space<vmem>>, vector<32x4xf32>
    %cst = arith.constant dense<0.000000e+00> : vector<8x4xf32>
    %2 = tpu.matmul %0, %1, %cst {dimension_numbers = #tpu.dot_dimension_numbers<[1], [0], [0], [1], [0, 0, 1, 1], [], []>} : vector<8x32xf32>, vector<32x4xf32>, vector<8x4xf32> -> vector<8x4xf32>
    %c0_3 = arith.constant 0 : index
    %c0_4 = arith.constant 0 : index
    %3 = vector.load %arg3[%c0_3, %c0_4] : memref<1x4xf32, #tpu.memory_space<vmem>>, vector<1x4xf32>
    %4 = vector.broadcast %3 : vector<1x4xf32> to vector<8x4xf32>
    %5 = arith.addf %2, %4 : vector<8x4xf32>
    %cst_5 = arith.constant 2.000000e+01 : f32
    %6 = vector.broadcast %cst_5 : f32 to vector<8x4xf32>
    %7 = arith.cmpf ogt, %5, %6 : vector<8x4xf32>
    %cst_6 = arith.constant 2.000000e+01 : f32
    %8 = vector.broadcast %cst_6 : f32 to vector<8x4xf32>
    %9 = arith.minimumf %5, %8 : vector<8x4xf32>
    %10 = math.exp %9 : vector<8x4xf32>
    %11 = math.log1p %10 : vector<8x4xf32>
    %12 = arith.select %7, %5, %11 : vector<8x4xi1>, vector<8x4xf32>
    %c0_7 = arith.constant 0 : index
    %c0_8 = arith.constant 0 : index
    %13 = vector.load %arg4[%c0_7, %c0_8] : memref<8x4xf32, #tpu.memory_space<vmem>>, vector<8x4xf32>
    tpu.vector_store %arg4[%c0_7, %c0_8], %12 {strides = array<i32>} : memref<8x4xf32, #tpu.memory_space<vmem>>, vector<8x4xf32>,
    return
  }
  func.func @transform_0(%arg0: i32) -> (i32, i32) {
    %c0_i32 = arith.constant 0 : i32
    %c0_i32_0 = arith.constant 0 : i32
    return %arg0, %c0_i32 : i32, i32
  }
  func.func @transform_1(%arg0: i32) -> (i32, i32) {
    %c0_i32 = arith.constant 0 : i32
    %c0_i32_0 = arith.constant 0 : i32
    %c0_i32_1 = arith.constant 0 : i32
    return %c0_i32, %c0_i32_0 : i32, i32
  }
  func.func @transform_2(%arg0: i32) -> (i32, i32) {
    %c0_i32 = arith.constant 0 : i32
    %c0_i32_0 = arith.constant 0 : i32
    %c0_i32_1 = arith.constant 0 : i32
    return %c0_i32, %c0_i32_0 : i32, i32
  }
  func.func @transform_3(%arg0: i32) -> (i32, i32) {
    %c0_i32 = arith.constant 0 : i32
    %c0_i32_0 = arith.constant 0 : i32
    return %arg0, %c0_i32 : i32, i32
  }
}

</mosaic_0001>

<llo_original>
// kernel: evidence_collector_apply.1
$region0: #{evidence_collector_apply.1}
  #allocation0 [shape = 'u32[]', space=smem, size = 0x4, offset = 0x4, fixed_abs, tag = 'smem constant byte address 0x4 - core index']
  #allocation1 [shape = 'u32[72,128]{1,0:T(1,128)}', space=vmem, size = 0x9000, scoped, tag = 'internal scratch']
  %s0 = inlined_call_operand.vmem [shape: f32[8,32], index: 0, kind: input, shape index: {}]
  %s1 = inlined_call_operand.vmem [shape: f32[32,4], index: 1, kind: input, shape index: {}]
  %s2 = inlined_call_operand.vmem [shape: f32[1,4], index: 2, kind: input, shape index: {}]
  %s3 = inlined_call_operand.vmem [shape: f32[8,4], index: 3, kind: output, shape index: {}]
  %s4 = sld [smem:[#allocation0]]
  $region22: #{evidence_collector_apply.1} parent=0
    _
  %s6 = ssub.s32 1, %s4
  %s7 = scalar_select 0, %s6, %s4
  // Predicated region
  $region2: #{evidence_collector_apply.1} parent=0 // pred_check
    _
  $region3: #{evidence_collector_apply.1} parent=0 // pred_check_branch
    %9 = sbr.rel (0) target = $region5
  $region4: #{evidence_collector_apply.1} parent=0 // pred_region
    _
  $region5: #{evidence_collector_apply.1} parent=0 // pred_fallthru
    _
  // Predicated region
  $region6: #{evidence_collector_apply.1} parent=0 // pred_check
    _
  $region7: #{evidence_collector_apply.1} parent=0 // pred_check_branch
    %11 = sbr.rel (0) target = $region9
  $region8: #{evidence_collector_apply.1} parent=0 // pred_region
    _
  $region9: #{evidence_collector_apply.1} parent=0 // pred_fallthru
    _
  // Predicated region
  $region10: #{evidence_collector_apply.1} parent=0 // pred_check
    _
  $region11: #{evidence_collector_apply.1} parent=0 // pred_check_branch
    %13 = sbr.rel (0) target = $region13
  $region12: #{evidence_collector_apply.1} parent=0 // pred_region
    _
  $region13: #{evidence_collector_apply.1} parent=0 // pred_fallthru
    _
  %v14 = vld [vmem:[%s0] sm:$0xff]
  %v15 = vld [vmem:[%s1] sm:$0xff]
  %v16 = vld [vmem:[%s1 + $0x8] sm:$0xff]
  %v17 = vld [vmem:[%s1 + $0x10] sm:$0xff]
  %v18 = vld [vmem:[%s1 + $0x18] sm:$0xff]
  %v19 = vld [vmem:[%s2] sm:$0x1]
  %v21 = vperm.slane %v19, 0
  %vm23 = vcmask 261120
  %v25 = vsel %vm23, %v14, 0
  %27 = vmatpush.msra.mxu0 0.0
  %28 = vmatpush.msra.mxu0 0.0
  %29 = vmatpush.msra.mxu0 0.0
  %30 = vmatpush.msra.mxu0 0.0
  %31 = vmatpush.msra.mxu0 0.0
  %32 = vmatpush.msra.mxu0 0.0
  %33 = vmatpush.msra.mxu0 0.0
  %34 = vmatpush.msra.mxu0 0.0
  %35 = vmatpush.msra.mxu0 0.0
  %36 = vmatpush.msra.mxu0 0.0
  %37 = vmatpush.msra.mxu0 0.0
  %38 = vmatpush.msra.mxu0 0.0
  %39 = vmatpush.msra.mxu0 %v18
  %40 = vmatpush.msra.mxu0 %v17
  %41 = vmatpush.msra.mxu0 %v16
  %42 = vmatpush.msra.mxu0 %v15
  %43 = vmatmul.f32.gmra.mxu0 %v25
  %v44 = vpop.f32.mrf.mxu0
  %v45 = vadd.f32 %v21, %v44
  %46 = vdwg.mxu0
  %vm47 = vcmp.gt.f32.partialorder %v45, 20.0
  %v48 = vmin.f32 %v45, 20.0
  %v49 = vmul.f32 %v48, 1.442695
  %v50 = vpow.pop %v49
  %v51 = vadd.f32 %v50, 1.0
  %v52 = vlog2.pop %v51
  %v53 = vmul.f32 %v52, 0.6931472
  %v54 = vmul.f32 -0.5, %v50
  %v55 = vadd.f32 %v54, 1.0
  %v56 = vmul.f32 %v55, %v50
  %v57 = vand.u32 2147483647, %v50
  %vm58 = vcmp.lt.f32.partialorder %v57, 0.0004427343
  %v59 = vsel %vm58, %v56, %v53
  %v60 = vsel %vm47, %v45, %v59
  %vm61 = vcmask 31744
  %62 = vst.msk [vmem:[%s3] sm:$0xff] %vm61, %v60
  // Predicated region
  $region14: #{evidence_collector_apply.1} parent=0 // pred_check
    _
  $region15: #{evidence_collector_apply.1} parent=0 // pred_check_branch
    %64 = sbr.rel (0) target = $region17
  $region16: #{evidence_collector_apply.1} parent=0 // pred_region
    _
  $region17: #{evidence_collector_apply.1} parent=0 // pred_fallthru
    _
  // Predicated region
  $region18: #{evidence_collector_apply.1} parent=0 // pred_check
    _
  $region19: #{evidence_collector_apply.1} parent=0 // pred_check_branch
    %66 = sbr.rel (0) target = $region21
  $region20: #{evidence_collector_apply.1} parent=0 // pred_region
    _
  $region21: #{evidence_collector_apply.1} parent=0 // pred_fallthru
    _

</llo_original>
